<compile_context>
chip_gen: v7x
topology: tpu7x:2x2x1
jax: 0.10.0
libtpu: 0.0.40
codegen_flags: <defaults>
</compile_context>

<pallas_src>
import functools

import jax
import jax.numpy as jnp
from jax import lax
from jax.experimental import pallas as pl
from jax.experimental.pallas import tpu as pltpu

_BATCH_NORM_EPSILON = 1e-5
GROWTH_K = 6
DROPOUT_RATE = 0.3  # unused at eval time (identity)


def _round_up(n, m):
    return (n + m - 1) // m * m


# ----------------------------- kernel -------------------------------------- #

def _conv3x3_im2col(x_cm, wmat, masks, width):
    """3x3 stride-1 same-padded conv in channel-major layout.

    x_cm:  (Cin, H*W)    f32 activations (row-major flattened spatial).
    wmat:  (Cout, 9*Cin) bf16 weights, rows ordered tap-major (ky, kx, ci).
    masks: (9, H*W)      f32 per-tap validity (zero-padding at image border).
    Returns (Cout, H*W) f32.
    """
    hw = x_cm.shape[1]
    cols = []
    t = 0
    for dy in (-1, 0, 1):
        for dx in (-1, 0, 1):
            off = dy * width + dx
            if off == 0:
                cols.append(x_cm)  # center tap: no shift, mask is all-ones
            else:
                # shifted[:, i] = x_cm[:, i + off]; wraparound killed by mask
                shifted = pltpu.roll(x_cm, shift=(-off) % hw, axis=1)
                cols.append(shifted * masks[t:t + 1, :])
            t += 1
    # Cin is padded to a multiple of 8 -> sublane-aligned concatenation.
    patches = jnp.concatenate(cols, axis=0).astype(jnp.bfloat16)   # (9*Cin, HW)
    return jnp.dot(wmat, patches, preferred_element_type=jnp.float32)


def _bottleneck_kernel(x_ref, w1_ref, w2_ref, m_ref, bias1_ref, bias2_ref,
                       out_ref, *, width):
    masks = m_ref[...]                                    # (9, HW)
    x = x_ref[0]                                          # (Cin_pad, HW) f32

    # bn1 + conv1 + conv1's BN are all folded into (w1, bias1); ReLU follows.
    h = _conv3x3_im2col(x, w1_ref[...], masks, width)
    h = jnp.maximum(h + bias1_ref[...], 0.0)              # (Cmid, HW)
    # Dropout2d: identity in eval mode.

    # bn2 + conv2 + conv2's BN folded into (w2, bias2); ReLU follows.
    h = _conv3x3_im2col(h, w2_ref[...], masks, width)
    h = jnp.maximum(h + bias2_ref[...], 0.0)
    # Dropout2d: identity in eval mode.

    out_ref[0] = h.astype(out_ref.dtype)                  # lane-dense store


# ----------------------------- wrapper -------------------------------------- #

def _full_spec(shape):
    nd = len(shape)
    return pl.BlockSpec(shape, lambda *args: (0,) * nd)


def _tap_masks(H, W):
    hw = H * W
    idx = jnp.arange(hw, dtype=jnp.int32)
    yy, xx = idx // W, idx % W
    rows = []
    for dy in (-1, 0, 1):
        for dx in (-1, 0, 1):
            valid = ((yy + dy >= 0) & (yy + dy < H) &
                     (xx + dx >= 0) & (xx + dx < W))
            rows.append(valid.astype(jnp.float32))
    return jnp.stack(rows, axis=0)                         # (9, HW)


def _fold_conv_block(w, s_in, b_in, s_out, b_out, masks, cin_pad):
    """Fold pre-conv (s_in, b_in) and post-conv (s_out, b_out) affine terms.

    w: (3, 3, Cin, Cout).  Returns
      wmat     (Cout, 9*Cin_pad) bf16
      bias_map (Cout, HW)        f32
    such that  conv(x*s_in + b_in, w)*s_out + b_out
           ==  im2col_conv(x, wmat) + bias_map   (zero-padded conv).
    """
    kh, kw, cin, cout = w.shape
    wf = w.astype(jnp.float32).reshape(kh * kw, cin, cout)        # (9, Cin, Cout)
    s_in = s_in.astype(jnp.float32)
    b_in = b_in.astype(jnp.float32)
    s_out = s_out.astype(jnp.float32)
    b_out = b_out.astype(jnp.float32)

    # Position-dependent bias from b_in (only valid taps contribute, matching
    # zero-padding of the bn'ed input), scaled by s_out, plus b_out.
    wb = jnp.einsum("tic,i->ct", wf, b_in)                        # (Cout, 9)
    bias_map = s_out[:, None] * (wb @ masks) + b_out[:, None]     # (Cout, HW)

    # Fold input-channel scale and output-channel scale into the weights.
    wf = wf * s_in[None, :, None] * s_out[None, None, :]
    if cin_pad != cin:
        wf = jnp.pad(wf, ((0, 0), (0, cin_pad - cin), (0, 0)))
    wmat = wf.reshape(kh * kw * cin_pad, cout).T.astype(jnp.bfloat16)
    return wmat, bias_map


def bottleneck_forward(x_nchw, params):
    N, cin, H, W = x_nchw.shape
    cmid = params["w1"].shape[-1]
    HW = H * W
    cin_p = _round_up(cin, 8)   # sublane-align the input channels

    # ---- tiny prep ops (weights / masks / bias maps only) ----
    x = x_nchw.reshape(N, cin, HW).astype(jnp.float32)
    if cin_p != cin:
        x = jnp.pad(x, ((0, 0), (0, cin_p - cin), (0, 0)))

    masks = _tap_masks(H, W)

    wmat1, bias1 = _fold_conv_block(params["w1"], params["s1"], params["b1"],
                                    params["sc1"], params["bc1"], masks, cin_p)
    wmat2, bias2 = _fold_conv_block(params["w2"], params["s2"], params["b2"],
                                    params["sc2"], params["bc2"], masks, cmid)

    kernel = functools.partial(_bottleneck_kernel, width=W)

    out = pl.pallas_call(
        kernel,
        out_shape=jax.ShapeDtypeStruct((N, cmid, HW), jnp.float32),
        grid_spec=pltpu.PrefetchScalarGridSpec(
            num_scalar_prefetch=0,
            grid=(N,),
            in_specs=[
                pl.BlockSpec((1, cin_p, HW), lambda n: (n, 0, 0)),
                _full_spec(wmat1.shape), _full_spec(wmat2.shape),
                _full_spec(masks.shape),
                _full_spec(bias1.shape), _full_spec(bias2.shape),
            ],
            out_specs=pl.BlockSpec((1, cmid, HW), lambda n: (n, 0, 0)),
        ),
        compiler_params=pltpu.CompilerParams(dimension_semantics=("parallel",)),
    )(x, wmat1, wmat2, masks, bias1, bias2)

    return out.reshape(N, cmid, H, W)                      # already NCHW


# -------------------------- parameter setup --------------------------------- #

def _fold_bn(gamma, beta, mean, var, eps=_BATCH_NORM_EPSILON):
    scale = gamma / jnp.sqrt(var + eps)
    bias = beta - mean * scale
    return scale.astype(jnp.float32), bias.astype(jnp.float32)


def init_params(key, in_channels, growth_k):
    cmid = 4 * growth_k
    keys = jax.random.split(key, 6)

    def bn_params(k, c):
        k1, k2, k3, k4 = jax.random.split(k, 4)
        gamma = 1.0 + 0.1 * jax.random.normal(k1, (c,), jnp.float32)
        beta = 0.1 * jax.random.normal(k2, (c,), jnp.float32)
        mean = 0.1 * jax.random.normal(k3, (c,), jnp.float32)
        var = 1.0 + 0.1 * jax.random.uniform(k4, (c,), jnp.float32)
        return _fold_bn(gamma, beta, mean, var)

    s1, b1 = bn_params(keys[0], in_channels)     # self.bn1
    sc1, bc1 = bn_params(keys[1], cmid)          # BN inside conv1 block
    s2, b2 = bn_params(keys[2], cmid)            # self.bn2
    sc2, bc2 = bn_params(keys[3], cmid)          # BN inside conv2 block
    w1 = 0.1 * jax.random.normal(keys[4], (3, 3, in_channels, cmid), jnp.float32)
    w2 = 0.1 * jax.random.normal(keys[5], (3, 3, cmid, cmid), jnp.float32)
    return dict(w1=w1, w2=w2, s1=s1, b1=b1, sc1=sc1, bc1=bc1,
                s2=s2, b2=b2, sc2=sc2, bc2=bc2)


# ----------------------------- reference ------------------------------------ #

def reference_forward(x_nchw, params):
    x = jnp.transpose(x_nchw, (0, 2, 3, 1)).astype(jnp.float32)

    def conv(v, w):
        return lax.conv_general_dilated(
            v, w, window_strides=(1, 1), padding=((1, 1), (1, 1)),
            dimension_numbers=("NHWC", "HWIO", "NHWC"),
            precision=lax.Precision.HIGHEST)

    x = x * params["s1"] + params["b1"]
    x = conv(x, params["w1"])
    x = jnp.maximum(x * params["sc1"] + params["bc1"], 0.0)
    x = x * params["s2"] + params["b2"]
    x = conv(x, params["w2"])
    x = jnp.maximum(x * params["sc2"] + params["bc2"], 0.0)
    return jnp.transpose(x, (0, 3, 1, 2))


if __name__ == "__main__":
    key = jax.random.PRNGKey(0)
    k_x, k_p = jax.random.split(key)
    N, Cin, H, W = 2, 4, 16, 16
    x = jax.random.normal(k_x, (N, Cin, H, W), jnp.float32)
    params = init_params(k_p, Cin, GROWTH_K)

    out = bottleneck_forward(x, params)
    out = jax.block_until_ready(out)

    assert out.shape == (N, 4 * GROWTH_K, H, W)
    ref = reference_forward(x, params)
    err = float(jnp.max(jnp.abs(out - ref)))
    assert err < 5e-2, f"max abs err {err}"
    print("KERNEL_OK")
</pallas_src>

<mosaic_0001>
module attributes {stable_mosaic.version = 11 : i64} {
  func.func @_bottleneck_kernel(%arg0: i32, %arg1: memref<1x8x256xf32, #tpu.memory_space<vmem>>, %arg2: memref<24x72xbf16, #tpu.memory_space<vmem>>, %arg3: memref<24x216xbf16, #tpu.memory_space<vmem>>, %arg4: memref<9x256xf32, #tpu.memory_space<vmem>>, %arg5: memref<24x256xf32, #tpu.memory_space<vmem>>, %arg6: memref<24x256xf32, #tpu.memory_space<vmem>>, %arg7: memref<1x24x256xf32, #tpu.memory_space<vmem>>) attributes {dimension_semantics = [#tpu.dimension_semantics<parallel>], iteration_bounds = array<i64: 2>, scalar_prefetch = 0 : i64, scratch_operands = 0 : i64, tpu.core_type = #tpu.core_type<tc>, window_params = [{transform_indices = @transform_0, window_bounds = array<i64: 1, 8, 256>}, {pipeline_mode = #tpu.pipeline_mode<synchronous>, transform_indices = @transform_1, window_bounds = array<i64: 24, 72>}, {pipeline_mode = #tpu.pipeline_mode<synchronous>, transform_indices = @transform_2, window_bounds = array<i64: 24, 216>}, {pipeline_mode = #tpu.pipeline_mode<synchronous>, transform_indices = @transform_3, window_bounds = array<i64: 9, 256>}, {pipeline_mode = #tpu.pipeline_mode<synchronous>, transform_indices = @transform_4, window_bounds = array<i64: 24, 256>}, {pipeline_mode = #tpu.pipeline_mode<synchronous>, transform_indices = @transform_5, window_bounds = array<i64: 24, 256>}, {transform_indices = @transform_6, window_bounds = array<i64: 1, 24, 256>}]} {
    %c0 = arith.constant 0 : index
    %c0_0 = arith.constant 0 : index
    %0 = vector.load %arg4[%c0, %c0_0] : memref<9x256xf32, #tpu.memory_space<vmem>>, vector<9x256xf32>
    %c0_1 = arith.constant 0 : index
    %c0_2 = arith.constant 0 : index
    %c0_3 = arith.constant 0 : index
    %1 = vector.load %arg1[%c0_1, %c0_2, %c0_3] : memref<1x8x256xf32, #tpu.memory_space<vmem>>, vector<1x8x256xf32>
    %2 = vector.shape_cast %1 : vector<1x8x256xf32> to vector<8x256xf32>
    %c0_4 = arith.constant 0 : index
    %c0_5 = arith.constant 0 : index
    %3 = vector.load %arg2[%c0_4, %c0_5] : memref<24x72xbf16, #tpu.memory_space<vmem>>, vector<24x72xbf16>
    %c17_i32 = arith.constant 17 : i32
    %4 = tpu.dynamic_rotate %2 by %c17_i32 dim 1 : vector<8x256xf32>, i32 -> vector<8x256xf32>
    %5 = vector.extract_strided_slice %0 {offsets = [0, 0], sizes = [1, 256], strides = [1, 1]} : vector<9x256xf32> to vector<1x256xf32>
    %6 = vector.broadcast %5 : vector<1x256xf32> to vector<8x256xf32>
    %7 = arith.mulf %4, %6 : vector<8x256xf32>
    %c16_i32 = arith.constant 16 : i32
    %8 = tpu.dynamic_rotate %2 by %c16_i32 dim 1 : vector<8x256xf32>, i32 -> vector<8x256xf32>
    %9 = vector.extract_strided_slice %0 {offsets = [1, 0], sizes = [1, 256], strides = [1, 1]} : vector<9x256xf32> to vector<1x256xf32>
    %10 = vector.broadcast %9 : vector<1x256xf32> to vector<8x256xf32>
    %11 = arith.mulf %8, %10 : vector<8x256xf32>
    %c15_i32 = arith.constant 15 : i32
    %12 = tpu.dynamic_rotate %2 by %c15_i32 dim 1 : vector<8x256xf32>, i32 -> vector<8x256xf32>
    %13 = vector.extract_strided_slice %0 {offsets = [2, 0], sizes = [1, 256], strides = [1, 1]} : vector<9x256xf32> to vector<1x256xf32>
    %14 = vector.broadcast %13 : vector<1x256xf32> to vector<8x256xf32>
    %15 = arith.mulf %12, %14 : vector<8x256xf32>
    %c1_i32 = arith.constant 1 : i32
    %16 = tpu.dynamic_rotate %2 by %c1_i32 dim 1 : vector<8x256xf32>, i32 -> vector<8x256xf32>
    %17 = vector.extract_strided_slice %0 {offsets = [3, 0], sizes = [1, 256], strides = [1, 1]} : vector<9x256xf32> to vector<1x256xf32>
    %18 = vector.broadcast %17 : vector<1x256xf32> to vector<8x256xf32>
    %19 = arith.mulf %16, %18 : vector<8x256xf32>
    %c255_i32 = arith.constant 255 : i32
    %20 = tpu.dynamic_rotate %2 by %c255_i32 dim 1 : vector<8x256xf32>, i32 -> vector<8x256xf32>
    %21 = vector.extract_strided_slice %0 {offsets = [5, 0], sizes = [1, 256], strides = [1, 1]} : vector<9x256xf32> to vector<1x256xf32>
    %22 = vector.broadcast %21 : vector<1x256xf32> to vector<8x256xf32>
    %23 = arith.mulf %20, %22 : vector<8x256xf32>
    %c241_i32 = arith.constant 241 : i32
    %24 = tpu.dynamic_rotate %2 by %c241_i32 dim 1 : vector<8x256xf32>, i32 -> vector<8x256xf32>
    %25 = vector.extract_strided_slice %0 {offsets = [6, 0], sizes = [1, 256], strides = [1, 1]} : vector<9x256xf32> to vector<1x256xf32>
    %26 = vector.broadcast %25 : vector<1x256xf32> to vector<8x256xf32>
    %27 = arith.mulf %24, %26 : vector<8x256xf32>
    %c240_i32 = arith.constant 240 : i32
    %28 = tpu.dynamic_rotate %2 by %c240_i32 dim 1 : vector<8x256xf32>, i32 -> vector<8x256xf32>
    %29 = vector.extract_strided_slice %0 {offsets = [7, 0], sizes = [1, 256], strides = [1, 1]} : vector<9x256xf32> to vector<1x256xf32>
    %30 = vector.broadcast %29 : vector<1x256xf32> to vector<8x256xf32>
    %31 = arith.mulf %28, %30 : vector<8x256xf32>
    %c239_i32 = arith.constant 239 : i32
    %32 = tpu.dynamic_rotate %2 by %c239_i32 dim 1 : vector<8x256xf32>, i32 -> vector<8x256xf32>
    %33 = vector.extract_strided_slice %0 {offsets = [8, 0], sizes = [1, 256], strides = [1, 1]} : vector<9x256xf32> to vector<1x256xf32>
    %34 = vector.broadcast %33 : vector<1x256xf32> to vector<8x256xf32>
    %35 = arith.mulf %32, %34 : vector<8x256xf32>
    %36 = tpu.concatenate %7, %11, %15, %19, %2, %23, %27, %31, %35 in 0 : vector<8x256xf32>, vector<8x256xf32>, vector<8x256xf32>, vector<8x256xf32>, vector<8x256xf32>, vector<8x256xf32>, vector<8x256xf32>, vector<8x256xf32>, vector<8x256xf32> -> vector<72x256xf32>
    %37 = arith.truncf %36 : vector<72x256xf32> to vector<72x256xbf16>
    %cst = arith.constant dense<0.000000e+00> : vector<24x256xf32>
    %38 = tpu.matmul %3, %37, %cst {dimension_numbers = #tpu.dot_dimension_numbers<[1], [0], [0], [1], [0, 0, 1, 1], [], []>} : vector<24x72xbf16>, vector<72x256xbf16>, vector<24x256xf32> -> vector<24x256xf32>
    %c0_6 = arith.constant 0 : index
    %c0_7 = arith.constant 0 : index
    %39 = vector.load %arg5[%c0_6, %c0_7] : memref<24x256xf32, #tpu.memory_space<vmem>>, vector<24x256xf32>
    %40 = arith.addf %38, %39 : vector<24x256xf32>
    %cst_8 = arith.constant 0.000000e+00 : f32
    %41 = vector.broadcast %cst_8 : f32 to vector<24x256xf32>
    %42 = arith.maximumf %40, %41 : vector<24x256xf32>
    %c0_9 = arith.constant 0 : index
    %c0_10 = arith.constant 0 : index
    %43 = vector.load %arg3[%c0_9, %c0_10] : memref<24x216xbf16, #tpu.memory_space<vmem>>, vector<24x216xbf16>
    %c17_i32_11 = arith.constant 17 : i32
    %44 = tpu.dynamic_rotate %42 by %c17_i32_11 dim 1 : vector<24x256xf32>, i32 -> vector<24x256xf32>
    %45 = vector.extract_strided_slice %0 {offsets = [0, 0], sizes = [1, 256], strides = [1, 1]} : vector<9x256xf32> to vector<1x256xf32>
    %46 = vector.broadcast %45 : vector<1x256xf32> to vector<24x256xf32>
    %47 = arith.mulf %44, %46 : vector<24x256xf32>
    %c16_i32_12 = arith.constant 16 : i32
    %48 = tpu.dynamic_rotate %42 by %c16_i32_12 dim 1 : vector<24x256xf32>, i32 -> vector<24x256xf32>
    %49 = vector.extract_strided_slice %0 {offsets = [1, 0], sizes = [1, 256], strides = [1, 1]} : vector<9x256xf32> to vector<1x256xf32>
    %50 = vector.broadcast %49 : vector<1x256xf32> to vector<24x256xf32>
    %51 = arith.mulf %48, %50 : vector<24x256xf32>
    %c15_i32_13 = arith.constant 15 : i32
    %52 = tpu.dynamic_rotate %42 by %c15_i32_13 dim 1 : vector<24x256xf32>, i32 -> vector<24x256xf32>
    %53 = vector.extract_strided_slice %0 {offsets = [2, 0], sizes = [1, 256], strides = [1, 1]} : vector<9x256xf32> to vector<1x256xf32>
    %54 = vector.broadcast %53 : vector<1x256xf32> to vector<24x256xf32>
    %55 = arith.mulf %52, %54 : vector<24x256xf32>
    %c1_i32_14 = arith.constant 1 : i32
    %56 = tpu.dynamic_rotate %42 by %c1_i32_14 dim 1 : vector<24x256xf32>, i32 -> vector<24x256xf32>
    %57 = vector.extract_strided_slice %0 {offsets = [3, 0], sizes = [1, 256], strides = [1, 1]} : vector<9x256xf32> to vector<1x256xf32>
    %58 = vector.broadcast %57 : vector<1x256xf32> to vector<24x256xf32>
    %59 = arith.mulf %56, %58 : vector<24x256xf32>
    %c255_i32_15 = arith.constant 255 : i32
    %60 = tpu.dynamic_rotate %42 by %c255_i32_15 dim 1 : vector<24x256xf32>, i32 -> vector<24x256xf32>
    %61 = vector.extract_strided_slice %0 {offsets = [5, 0], sizes = [1, 256], strides = [1, 1]} : vector<9x256xf32> to vector<1x256xf32>
    %62 = vector.broadcast %61 : vector<1x256xf32> to vector<24x256xf32>
    %63 = arith.mulf %60, %62 : vector<24x256xf32>
    %c241_i32_16 = arith.constant 241 : i32
    %64 = tpu.dynamic_rotate %42 by %c241_i32_16 dim 1 : vector<24x256xf32>, i32 -> vector<24x256xf32>
    %65 = vector.extract_strided_slice %0 {offsets = [6, 0], sizes = [1, 256], strides = [1, 1]} : vector<9x256xf32> to vector<1x256xf32>
    %66 = vector.broadcast %65 : vector<1x256xf32> to vector<24x256xf32>
    %67 = arith.mulf %64, %66 : vector<24x256xf32>
    %c240_i32_17 = arith.constant 240 : i32
    %68 = tpu.dynamic_rotate %42 by %c240_i32_17 dim 1 : vector<24x256xf32>, i32 -> vector<24x256xf32>
    %69 = vector.extract_strided_slice %0 {offsets = [7, 0], sizes = [1, 256], strides = [1, 1]} : vector<9x256xf32> to vector<1x256xf32>
    %70 = vector.broadcast %69 : vector<1x256xf32> to vector<24x256xf32>
    %71 = arith.mulf %68, %70 : vector<24x256xf32>
    %c239_i32_18 = arith.constant 239 : i32
    %72 = tpu.dynamic_rotate %42 by %c239_i32_18 dim 1 : vector<24x256xf32>, i32 -> vector<24x256xf32>
    %73 = vector.extract_strided_slice %0 {offsets = [8, 0], sizes = [1, 256], strides = [1, 1]} : vector<9x256xf32> to vector<1x256xf32>
    %74 = vector.broadcast %73 : vector<1x256xf32> to vector<24x256xf32>
    %75 = arith.mulf %72, %74 : vector<24x256xf32>
    %76 = tpu.concatenate %47, %51, %55, %59, %42, %63, %67, %71, %75 in 0 : vector<24x256xf32>, vector<24x256xf32>, vector<24x256xf32>, vector<24x256xf32>, vector<24x256xf32>, vector<24x256xf32>, vector<24x256xf32>, vector<24x256xf32>, vector<24x256xf32> -> vector<216x256xf32>
    %77 = arith.truncf %76 : vector<216x256xf32> to vector<216x256xbf16>
    %cst_19 = arith.constant dense<0.000000e+00> : vector<24x256xf32>
    %78 = tpu.matmul %43, %77, %cst_19 {dimension_numbers = #tpu.dot_dimension_numbers<[1], [0], [0], [1], [0, 0, 1, 1], [], []>} : vector<24x216xbf16>, vector<216x256xbf16>, vector<24x256xf32> -> vector<24x256xf32>
    %c0_20 = arith.constant 0 : index
    %c0_21 = arith.constant 0 : index
    %79 = vector.load %arg6[%c0_20, %c0_21] : memref<24x256xf32, #tpu.memory_space<vmem>>, vector<24x256xf32>
    %80 = arith.addf %78, %79 : vector<24x256xf32>
    %cst_22 = arith.constant 0.000000e+00 : f32
    %81 = vector.broadcast %cst_22 : f32 to vector<24x256xf32>
    %82 = arith.maximumf %80, %81 : vector<24x256xf32>
    %c0_23 = arith.constant 0 : index
    %c0_24 = arith.constant 0 : index
    %c0_25 = arith.constant 0 : index
    %83 = vector.load %arg7[%c0_23, %c0_24, %c0_25] : memref<1x24x256xf32, #tpu.memory_space<vmem>>, vector<1x24x256xf32>
    %84 = vector.shape_cast %83 : vector<1x24x256xf32> to vector<24x256xf32>
    %85 = vector.shape_cast %82 : vector<24x256xf32> to vector<1x24x256xf32>
    tpu.vector_store %arg7[%c0_23, %c0_24, %c0_25], %85 {strides = array<i32>} : memref<1x24x256xf32, #tpu.memory_space<vmem>>, vector<1x24x256xf32>,
    return
  }
  func.func @transform_0(%arg0: i32) -> (i32, i32, i32) {
    %c0_i32 = arith.constant 0 : i32
    %c0_i32_0 = arith.constant 0 : i32
    %c0_i32_1 = arith.constant 0 : i32
    return %arg0, %c0_i32, %c0_i32_0 : i32, i32, i32
  }
  func.func @transform_1(%arg0: i32) -> (i32, i32) {
    %c0_i32 = arith.constant 0 : i32
    %c0_i32_0 = arith.constant 0 : i32
    %c0_i32_1 = arith.constant 0 : i32
    return %c0_i32, %c0_i32_0 : i32, i32
  }
  func.func @transform_2(%arg0: i32) -> (i32, i32) {
    %c0_i32 = arith.constant 0 : i32
    %c0_i32_0 = arith.constant 0 : i32
    %c0_i32_1 = arith.constant 0 : i32
    return %c0_i32, %c0_i32_0 : i32, i32
  }
  func.func @transform_3(%arg0: i32) -> (i32, i32) {
    %c0_i32 = arith.constant 0 : i32
    %c0_i32_0 = arith.constant 0 : i32
    %c0_i32_1 = arith.constant 0 : i32
    return %c0_i32, %c0_i32_0 : i32, i32
  }
  func.func @transform_4(%arg0: i32) -> (i32, i32) {
    %c0_i32 = arith.constant 0 : i32
    %c0_i32_0 = arith.constant 0 : i32
    %c0_i32_1 = arith.constant 0 : i32
    return %c0_i32, %c0_i32_0 : i32, i32
  }
  func.func @transform_5(%arg0: i32) -> (i32, i32) {
    %c0_i32 = arith.constant 0 : i32
    %c0_i32_0 = arith.constant 0 : i32
    %c0_i32_1 = arith.constant 0 : i32
    return %c0_i32, %c0_i32_0 : i32, i32
  }
  func.func @transform_6(%arg0: i32) -> (i32, i32, i32) {
    %c0_i32 = arith.constant 0 : i32
    %c0_i32_0 = arith.constant 0 : i32
    %c0_i32_1 = arith.constant 0 : i32
    return %arg0, %c0_i32, %c0_i32_0 : i32, i32, i32
  }
}

</mosaic_0001>

<llo_original>
// kernel: tpu_custom_call.1
$region0: #{tpu_custom_call.1}
  #allocation0 [shape = 'u32[]', space=smem, size = 0x4, offset = 0x4, fixed_abs, tag = 'smem constant byte address 0x4 - core index']
  #allocation1 [shape = 'u32[144,128]{1,0:T(1,128)}', space=vmem, size = 0x12000, scoped, tag = 'internal scratch']
  %s0 = inlined_call_operand.hbm [shape: f32[2,8,256], index: 0, kind: input, shape index: {}]
  %s1 = inlined_call_operand.hbm [shape: bf16[24,72], index: 1, kind: input, shape index: {}]
  %s2 = inlined_call_operand.hbm [shape: bf16[24,216], index: 2, kind: input, shape index: {}]
  %s3 = inlined_call_operand.hbm [shape: f32[9,256], index: 3, kind: input, shape index: {}]
  %s4 = inlined_call_operand.hbm [shape: f32[24,256], index: 4, kind: input, shape index: {}]
  %s5 = inlined_call_operand.hbm [shape: f32[24,256], index: 5, kind: input, shape index: {}]
  %s6 = inlined_call_operand.hbm [shape: f32[2,24,256], index: 6, kind: output, shape index: {}]
  %s7 = sld [smem:[#allocation0]]
  $region81: #{tpu_custom_call.1} parent=0
    _
  %s9 = ssub.s32 1, %s7
  %s10 = scalar_select 0, %s9, %s7
  $region1: #{tpu_custom_call.1} parent=0
    #allocation2 [shape = 'u8[16384]{0}', space=vmem, size = 0x4000, scoped, tag = 'input window, operand 0']
    #allocation3 [shape = 's32[2]{0}', space=sflag, size = 0x8, scoped, tag = 'scoped memory for tpu_custom_call.1']
    #allocation4 [shape = 's32[2]{0}', space=sflag, size = 0x8, scoped, tag = 'scoped memory for tpu_custom_call.1']
    #allocation5 [shape = 'u8[6144]{0}', space=vmem, size = 0x1800, scoped, tag = 'input window, operand 1, single buffered']
    #allocation6 [shape = 's32[1]{0}', space=sflag, size = 0x4, scoped, tag = 'scoped memory for tpu_custom_call.1']
    #allocation7 [shape = 'u8[12288]{0}', space=vmem, size = 0x3000, scoped, tag = 'input window, operand 2, single buffered']
    #allocation8 [shape = 'u8[16384]{0}', space=vmem, size = 0x4000, scoped, tag = 'input window, operand 3, single buffered']
    #allocation9 [shape = 's32[1]{0}', space=sflag, size = 0x4, scoped, tag = 'scoped memory for tpu_custom_call.1']
    #allocation10 [shape = 'u8[24576]{0}', space=vmem, size = 0x6000, scoped, tag = 'input window, operand 4, single buffered']
    #allocation11 [shape = 'u8[24576]{0}', space=vmem, size = 0x6000, scoped, tag = 'input window, operand 5, single buffered']
    #allocation12 [shape = 's32[1]{0}', space=sflag, size = 0x4, scoped, tag = 'scoped memory for tpu_custom_call.1']
    #allocation13 [shape = 'u8[49152]{0}', space=vmem, size = 0xc000, scoped, tag = 'output window, operand 0']
    %11 = vsyncpa [#allocation3], 0
    %s12 = scalar_lea.sflag [#allocation3], 1
    %13 = vsyncpa %s12, 0
    %14 = vsyncpa [#allocation6], 0
    %15 = vsyncpa [#allocation9], 0
    %16 = vsyncpa [#allocation12], 0
    %17 = vsyncpa [#allocation4], 0
    %s18 = scalar_lea.sflag [#allocation4], 1
    %19 = vsyncpa %s18, 0
    loop: start=0, step=1, limit=4
    $region2: #{tpu_custom_call.1} parent=1 // loop_pre_header
      _
    $region3: #{tpu_custom_call.1} parent=1 // loop_header
      %s21 = sphi 0, %s25
      %p22 = scmp.ge.s32.totalorder %s21, 4
      %s31 = sphi 0, %s33
      %s34 = sphi 0, %s31
      %s35 = sphi 0, %s34
      %s51 = sphi 0, %s35
      %s55 = sphi 0, %s55
      %s57 = sphi 0, %s55
      %s58 = sphi 0, %s57
      %s72 = sphi 0, %s58
      %s76 = sphi 0, %s76
      %s78 = sphi 0, %s76
      %s79 = sphi 0, %s78
      %s93 = sphi 0, %s79
      %s97 = sphi 0, %s97
      %s99 = sphi 0, %s97
      %s100 = sphi 0, %s99
      %s114 = sphi 0, %s100
      %s118 = sphi 0, %s118
      %s120 = sphi 0, %s118
      %s121 = sphi 0, %s120
      %s135 = sphi 0, %s121
      %s139 = sphi 0, %s139
      %s141 = sphi 0, %s139
      %s142 = sphi 0, %s141
      %s156 = sphi 0, %s142
      %s162 = sphi 0, %s164
      %s165 = sphi 0, %s162
      %s166 = sphi 0, %s165
      %s182 = sphi 0, %s166
    $region4: #{tpu_custom_call.1} parent=1 // loop_header_branch
      %24 = sbr.rel (%p22) target = $region8
    $region5: #{tpu_custom_call.1} parent=1 // loop_body
      %s26 = ssub.s32 %s21, 1
      %s27 = ssub.s32 %s21, 2
      %s28 = sadd.s32 %s21, 1
      %s29 = ssub.s32 %s21, %s28
      %p30 = scmp.eq.s32.totalorder %s29, 0
      %s32 = sadd.s32 %s31, 1
      %s33 = scalar_select %p30, %s31, %s32
      %p36 = pneg %p30
      %p37 = scmp.eq.s32.totalorder %s21, 1
      %p38 = por %p36, %p37
      %p39 = scmp.ne.s32.totalorder %s31, %s34
      %p40 = scmp.eq.s32.totalorder %s21, 0
      %p41 = por %p39, %p40
      %p42 = scmp.ne.s32.totalorder %s31, %s34
      %p43 = scmp.eq.s32.totalorder %s26, 1
      %p44 = por %p42, %p43
      %p45 = scmp.ne.s32.totalorder %s34, %s35
      %p46 = scmp.eq.s32.totalorder %s26, 0
      %p47 = por %p45, %p46
      %p48 = scmp.ne.s32.totalorder %s34, %s35
      %p49 = scmp.eq.s32.totalorder %s27, 1
      %p50 = por %p48, %p49
      %p52 = scmp.ne.s32.totalorder %s35, %s51
      %p53 = scmp.eq.s32.totalorder %s27, 0
      %p54 = por %p52, %p53
      %s56 = sadd.s32 %s55, 1
      %p59 = scmp.eq.s32.totalorder %s21, 1
      %p60 = scmp.ne.s32.totalorder %s55, %s57
      %p61 = scmp.eq.s32.totalorder %s21, 0
      %p62 = por %p60, %p61
      %p63 = scmp.ne.s32.totalorder %s55, %s57
      %p64 = scmp.eq.s32.totalorder %s26, 1
      %p65 = por %p63, %p64
      %p66 = scmp.ne.s32.totalorder %s57, %s58
      %p67 = scmp.eq.s32.totalorder %s26, 0
      %p68 = por %p66, %p67
      %p69 = scmp.ne.s32.totalorder %s57, %s58
      %p70 = scmp.eq.s32.totalorder %s27, 1
      %p71 = por %p69, %p70
      %p73 = scmp.ne.s32.totalorder %s58, %s72
      %p74 = scmp.eq.s32.totalorder %s27, 0
      %p75 = por %p73, %p74
      %s77 = sadd.s32 %s76, 1
      %p80 = scmp.eq.s32.totalorder %s21, 1
      %p81 = scmp.ne.s32.totalorder %s76, %s78
      %p82 = scmp.eq.s32.totalorder %s21, 0
      %p83 = por %p81, %p82
      %p84 = scmp.ne.s32.totalorder %s76, %s78
      %p85 = scmp.eq.s32.totalorder %s26, 1
      %p86 = por %p84, %p85
      %p87 = scmp.ne.s32.totalorder %s78, %s79
      %p88 = scmp.eq.s32.totalorder %s26, 0
      %p89 = por %p87, %p88
      %p90 = scmp.ne.s32.totalorder %s78, %s79
      %p91 = scmp.eq.s32.totalorder %s27, 1
      %p92 = por %p90, %p91
      %p94 = scmp.ne.s32.totalorder %s79, %s93
      %p95 = scmp.eq.s32.totalorder %s27, 0
      %p96 = por %p94, %p95
      %s98 = sadd.s32 %s97, 1
      %p101 = scmp.eq.s32.totalorder %s21, 1
      %p102 = scmp.ne.s32.totalorder %s97, %s99
      %p103 = scmp.eq.s32.totalorder %s21, 0
      %p104 = por %p102, %p103
      %p105 = scmp.ne.s32.totalorder %s97, %s99
      %p106 = scmp.eq.s32.totalorder %s26, 1
      %p107 = por %p105, %p106
      %p108 = scmp.ne.s32.totalorder %s99, %s100
      %p109 = scmp.eq.s32.totalorder %s26, 0
      %p110 = por %p108, %p109
      %p111 = scmp.ne.s32.totalorder %s99, %s100
      %p112 = scmp.eq.s32.totalorder %s27, 1
      %p113 = por %p111, %p112
      %p115 = scmp.ne.s32.totalorder %s100, %s114
      %p116 = scmp.eq.s32.totalorder %s27, 0
      %p117 = por %p115, %p116
      %s119 = sadd.s32 %s118, 1
      %p122 = scmp.eq.s32.totalorder %s21, 1
      %p123 = scmp.ne.s32.totalorder %s118, %s120
      %p124 = scmp.eq.s32.totalorder %s21, 0
      %p125 = por %p123, %p124
      %p126 = scmp.ne.s32.totalorder %s118, %s120
      %p127 = scmp.eq.s32.totalorder %s26, 1
      %p128 = por %p126, %p127
      %p129 = scmp.ne.s32.totalorder %s120, %s121
      %p130 = scmp.eq.s32.totalorder %s26, 0
      %p131 = por %p129, %p130
      %p132 = scmp.ne.s32.totalorder %s120, %s121
      %p133 = scmp.eq.s32.totalorder %s27, 1
      %p134 = por %p132, %p133
      %p136 = scmp.ne.s32.totalorder %s121, %s135
      %p137 = scmp.eq.s32.totalorder %s27, 0
      %p138 = por %p136, %p137
      %s140 = sadd.s32 %s139, 1
      %p143 = scmp.eq.s32.totalorder %s21, 1
      %p144 = scmp.ne.s32.totalorder %s139, %s141
      %p145 = scmp.eq.s32.totalorder %s21, 0
      %p146 = por %p144, %p145
      %p147 = scmp.ne.s32.totalorder %s139, %s141
      %p148 = scmp.eq.s32.totalorder %s26, 1
      %p149 = por %p147, %p148
      %p150 = scmp.ne.s32.totalorder %s141, %s142
      %p151 = scmp.eq.s32.totalorder %s26, 0
      %p152 = por %p150, %p151
      %p153 = scmp.ne.s32.totalorder %s141, %s142
      %p154 = scmp.eq.s32.totalorder %s27, 1
      %p155 = por %p153, %p154
      %p157 = scmp.ne.s32.totalorder %s142, %s156
      %p158 = scmp.eq.s32.totalorder %s27, 0
      %p159 = por %p157, %p158
      %s160 = ssub.s32 %s21, %s28
      %p161 = scmp.eq.s32.totalorder %s160, 0
      %s163 = sadd.s32 %s162, 1
      %s164 = scalar_select %p161, %s162, %s163
      %p167 = pneg %p161
      %p168 = scmp.eq.s32.totalorder %s21, 1
      %p169 = por %p167, %p168
      %p170 = scmp.ne.s32.totalorder %s162, %s165
      %p171 = scmp.eq.s32.totalorder %s21, 0
      %p172 = por %p170, %p171
      %p173 = scmp.ne.s32.totalorder %s162, %s165
      %p174 = scmp.eq.s32.totalorder %s26, 1
      %p175 = por %p173, %p174
      %p176 = scmp.ne.s32.totalorder %s165, %s166
      %p177 = scmp.eq.s32.totalorder %s26, 0
      %p178 = por %p176, %p177
      %p179 = scmp.ne.s32.totalorder %s165, %s166
      %p180 = scmp.eq.s32.totalorder %s27, 1
      %p181 = por %p179, %p180
      %p183 = scmp.ne.s32.totalorder %s166, %s182
      %p184 = scmp.eq.s32.totalorder %s27, 0
      %p185 = por %p183, %p184
      %p186 = scmp.le.s32.totalorder 1, %s21
      %p187 = scmp.lt.s32.totalorder %s21, 3
      %p188 = pnand %p186, %p187
      %p189 = pneg %p188
      // Predicated region
      $region9: #{tpu_custom_call.1} parent=5 // pred_check
        _
      $region10: #{tpu_custom_call.1} parent=5 // pred_check_branch
        %191 = sbr.rel (%p188) target = $region12
      $region11: #{tpu_custom_call.1} parent=5 // pred_region
        %s192 = ssub.s32 %s21, 1
        // Predicated region
        $region13: #{tpu_custom_call.1} parent=11 // pred_check
          %p193 = pneg %p68
        $region14: #{tpu_custom_call.1} parent=11 // pred_check_branch
          %195 = sbr.rel (%p193) target = $region16
        $region15: #{tpu_custom_call.1} parent=11 // pred_region
          %s197 = ssub.s32 192, 192
          %198 = vsyncadd [#allocation6], %s197
          %s199 = sshll.u32 [#allocation5], 4
          %s200 = int_to_ptr.vmem [resolvable:$true] %s199
          %205 = dma.hbm_to_vmem [thread:$0]  %s1, 192, %s200, [#allocation6], 64, 64, 4
        $region16: #{tpu_custom_call.1} parent=11 // pred_fallthru
          _
        // Predicated region
        $region17: #{tpu_custom_call.1} parent=11 // pred_check
          %p206 = pneg %p89
        $region18: #{tpu_custom_call.1} parent=11 // pred_check_branch
          %208 = sbr.rel (%p206) target = $region20
        $region19: #{tpu_custom_call.1} parent=11 // pred_region
          %s210 = ssub.s32 384, 384
          %211 = vsyncadd [#allocation6], %s210
          %s212 = sshll.u32 [#allocation7], 4
          %s213 = int_to_ptr.vmem [resolvable:$true] %s212
          %218 = dma.hbm_to_vmem [thread:$0]  %s2, 384, %s213, [#allocation6], 128, 128, 8
        $region20: #{tpu_custom_call.1} parent=11 // pred_fallthru
          _
        // Predicated region
        $region21: #{tpu_custom_call.1} parent=11 // pred_check
          %p219 = pneg %p110
        $region22: #{tpu_custom_call.1} parent=11 // pred_check_branch
          %221 = sbr.rel (%p219) target = $region24
        $region23: #{tpu_custom_call.1} parent=11 // pred_region
          %s223 = ssub.s32 512, 512
          %224 = vsyncadd [#allocation9], %s223
          %s225 = sshll.u32 [#allocation8], 4
          %s226 = int_to_ptr.vmem [resolvable:$true] %s225
          %231 = dma.hbm_to_vmem [thread:$0]  %s3, 512, %s226, [#allocation9], 256, 256, 16
        $region24: #{tpu_custom_call.1} parent=11 // pred_fallthru
          _
        // Predicated region
        $region25: #{tpu_custom_call.1} parent=11 // pred_check
          %p232 = pneg %p131
        $region26: #{tpu_custom_call.1} parent=11 // pred_check_branch
          %234 = sbr.rel (%p232) target = $region28
        $region27: #{tpu_custom_call.1} parent=11 // pred_region
          %s236 = ssub.s32 768, 768
          %237 = vsyncadd [#allocation9], %s236
          %s238 = sshll.u32 [#allocation10], 4
          %s239 = int_to_ptr.vmem [resolvable:$true] %s238
          %244 = dma.hbm_to_vmem [thread:$0]  %s4, 768, %s239, [#allocation9], 256, 256, 16
        $region28: #{tpu_custom_call.1} parent=11 // pred_fallthru
          _
        // Predicated region
        $region29: #{tpu_custom_call.1} parent=11 // pred_check
          %p245 = pneg %p152
        $region30: #{tpu_custom_call.1} parent=11 // pred_check_branch
          %247 = sbr.rel (%p245) target = $region32
        $region31: #{tpu_custom_call.1} parent=11 // pred_region
          %s249 = ssub.s32 768, 768
          %250 = vsyncadd [#allocation12], %s249
          %s251 = sshll.u32 [#allocation11], 4
          %s252 = int_to_ptr.vmem [resolvable:$true] %s251
          %257 = dma.hbm_to_vmem [thread:$0]  %s5, 768, %s252, [#allocation12], 256, 256, 16
        $region32: #{tpu_custom_call.1} parent=11 // pred_fallthru
          _
      $region12: #{tpu_custom_call.1} parent=5 // pred_fallthru
        _
      %p258 = scmp.lt.s32.totalorder %s21, 2
      // Predicated region
      $region33: #{tpu_custom_call.1} parent=5 // pred_check
        %p259 = pneg %p258
      $region34: #{tpu_custom_call.1} parent=5 // pred_check_branch
        %261 = sbr.rel (%p259) target = $region36
      $region35: #{tpu_custom_call.1} parent=5 // pred_region
        // Predicated region
        $region37: #{tpu_custom_call.1} parent=35 // pred_check
          %p262 = pneg %p41
        $region38: #{tpu_custom_call.1} parent=35 // pred_check_branch
          %264 = sbr.rel (%p262) target = $region40
        $region39: #{tpu_custom_call.1} parent=35 // pred_region
          %s265 = sand.u32 %s31, 1
          %s266 = scalar_lea.sflag [#allocation3], %s265
          %s267 = sand.u32 %s31, 1
          %s268 = smul.addr %s267, 16
          %s269 = scalar_lea.vmem [#allocation2], %s268
          %s271 = ssub.s32 256, 256
          %272 = vsyncadd %s266, %s271
          %s273 = smul.addr %s21, 2
          %s274 = smul.addr %s273, 128
          %s275 = scalar_lea.hbm %s0, %s274
          %s277 = sshll.u32 %s269, 4
          %s278 = int_to_ptr.vmem [resolvable:$true] %s277
          %280 = dma.hbm_to_vmem [thread:$0]  %s275, 256, %s278, %s266
        $region40: #{tpu_custom_call.1} parent=35 // pred_fallthru
          _
      $region36: #{tpu_custom_call.1} parent=5 // pred_fallthru
        _
      %p281 = scmp.le.s32.totalorder 1, %s21
      %p282 = scmp.lt.s32.totalorder %s21, 3
      %p283 = pnand %p281, %p282
      %p284 = pneg %p283
      // Predicated region
      $region41: #{tpu_custom_call.1} parent=5 // pred_check
        _
      $region42: #{tpu_custom_call.1} parent=5 // pred_check_branch
        %286 = sbr.rel (%p283) target = $region44
      $region43: #{tpu_custom_call.1} parent=5 // pred_region
        %s287 = ssub.s32 %s21, 1
        %s288 = sand.u32 %s34, 1
        %s289 = scalar_lea.sflag [#allocation3], %s288
        %s290 = sand.u32 %s34, 1
        %s291 = smul.addr %s290, 16
        %s292 = scalar_lea.vmem [#allocation2], %s291
        // Predicated region
        $region45: #{tpu_custom_call.1} parent=43 // pred_check
          %p293 = pneg %p47
        $region46: #{tpu_custom_call.1} parent=43 // pred_check_branch
          %295 = sbr.rel (%p293) target = $region48
        $region47: #{tpu_custom_call.1} parent=43 // pred_region
          %296 = dma.done %s289, 256
        $region48: #{tpu_custom_call.1} parent=43 // pred_fallthru
          _
        // Predicated region
        $region49: #{tpu_custom_call.1} parent=43 // pred_check
          %p297 = pneg %p68
        $region50: #{tpu_custom_call.1} parent=43 // pred_check_branch
          %299 = sbr.rel (%p297) target = $region52
        $region51: #{tpu_custom_call.1} parent=43 // pred_region
          %300 = dma.done [#allocation6], 192
        $region52: #{tpu_custom_call.1} parent=43 // pred_fallthru
          _
        // Predicated region
        $region53: #{tpu_custom_call.1} parent=43 // pred_check
          %p301 = pneg %p89
        $region54: #{tpu_custom_call.1} parent=43 // pred_check_branch
          %303 = sbr.rel (%p301) target = $region56
        $region55: #{tpu_custom_call.1} parent=43 // pred_region
          %304 = dma.done [#allocation6], 384
        $region56: #{tpu_custom_call.1} parent=43 // pred_fallthru
          _
        // Predicated region
        $region57: #{tpu_custom_call.1} parent=43 // pred_check
          %p305 = pneg %p110
        $region58: #{tpu_custom_call.1} parent=43 // pred_check_branch
          %307 = sbr.rel (%p305) target = $region60
        $region59: #{tpu_custom_call.1} parent=43 // pred_region
          %308 = dma.done [#allocation9], 512
        $region60: #{tpu_custom_call.1} parent=43 // pred_fallthru
          _
        // Predicated region
        $region61: #{tpu_custom_call.1} parent=43 // pred_check
          %p309 = pneg %p131
        $region62: #{tpu_custom_call.1} parent=43 // pred_check_branch
          %311 = sbr.rel (%p309) target = $region64
        $region63: #{tpu_custom_call.1} parent=43 // pred_region
          %312 = dma.done [#allocation9], 768
        $region64: #{tpu_custom_call.1} parent=43 // pred_fallthru
          _
        // Predicated region
        $region65: #{tpu_custom_call.1} parent=43 // pred_check
          %p313 = pneg %p152
        $region66: #{tpu_custom_call.1} parent=43 // pred_check_branch
          %315 = sbr.rel (%p313) target = $region68
        $region67: #{tpu_custom_call.1} parent=43 // pred_region
          %316 = dma.done [#allocation12], 768
        $region68: #{tpu_custom_call.1} parent=43 // pred_fallthru
          _
        %s317 = sand.u32 %s34, 1
        %s318 = scalar_lea.sflag [#allocation3], %s317
        %s319 = sand.u32 %s34, 1
        %s320 = smul.addr %s319, 16
        %s321 = scalar_lea.vmem [#allocation2], %s320
        %p322 = pneg %p47
        %p323 = pneg %p44
        %p324 = pneg %p68
        %p325 = pneg %p65
        %p326 = pneg %p89
        %p327 = pneg %p86
        %p328 = pneg %p110
        %p329 = pneg %p107
        %p330 = pneg %p131
        %p331 = pneg %p128
        %p332 = pneg %p152
        %p333 = pneg %p149
        %p334 = pneg %p178
        %p335 = pneg %p175
        %s336 = sand.u32 %s165, 1
        %s337 = scalar_lea.sflag [#allocation4], %s336
        %s338 = sand.u32 %s165, 1
        %s339 = smul.addr %s338, 48
        %s340 = scalar_lea.vmem [#allocation13], %s339
        %v342 = vld [vmem:[#allocation8] sm:$0xff]
        %v343 = vld [vmem:[#allocation8 + $0x8] sm:$0xff]
        %v344 = vld [vmem:[#allocation8 + $0x10] sm:$0x1]
        %v345 = vld [vmem:[#allocation8 + $0x18] sm:$0x1]
        %v346 = vld [vmem:[%s292] sm:$0xff]
        %v347 = vld [vmem:[%s292 + $0x8] sm:$0xff]
        %v348 = vld [vmem:[#allocation5] sm:$0xf]
        %v349 = vld [vmem:[#allocation5 + $0x4] sm:$0xf]
        %v350 = vld [vmem:[#allocation5 + $0x8] sm:$0xf]
        %351 = vrot.lane.b32.xlu0 %v346, 17
        %v352 = vpop.permute.xlu0 %351
        %353 = vrot.lane.b32.xlu0 %v347, 17
        %v354 = vpop.permute.xlu0 %353
        %v355 = vlaneseq
        %v356 = vand.u32 %v355, 127
        %vm357 = vcmp.lt.s32.totalorder %v356, 17
        %v358 = vsel %vm357, %v352, %v354
        %v359 = vsel %vm357, %v354, %v352
        %v360 = vlaneseq
        %v361 = vshrl.u32 %v360, 7
        %v362 = vsub.s32 0, %v361
        %v363 = vrot.slane %v342, %v362
        %v364 = vlaneseq
        %v365 = vshrl.u32 %v364, 7
        %v366 = vsub.s32 0, %v365
        %v367 = vrot.slane %v343, %v366
        %v368 = vmul.f32 %v359, %v363
        %v369 = vmul.f32 %v358, %v367
        %370 = vrot.lane.b32.xlu0 %v346, 16
        %v371 = vpop.permute.xlu0 %370
        %372 = vrot.lane.b32.xlu0 %v347, 16
        %v373 = vpop.permute.xlu0 %372
        %vm374 = vcmp.lt.s32.totalorder %v356, 16
        %v375 = vsel %vm374, %v371, %v373
        %v376 = vsel %vm374, %v373, %v371
        %v377 = vlaneseq
        %v378 = vshrl.u32 %v377, 7
        %v379 = vsub.s32 1, %v378
        %v380 = vrot.slane %v342, %v379
        %v381 = vlaneseq
        %v382 = vshrl.u32 %v381, 7
        %v383 = vsub.s32 1, %v382
        %v384 = vrot.slane %v343, %v383
        %v385 = vmul.f32 %v376, %v380
        %v386 = vmul.f32 %v375, %v384
        %387 = vrot.lane.b32.xlu0 %v346, 15
        %v388 = vpop.permute.xlu0 %387
        %389 = vrot.lane.b32.xlu0 %v347, 15
        %v390 = vpop.permute.xlu0 %389
        %vm391 = vcmp.lt.s32.totalorder %v356, 15
        %v392 = vsel %vm391, %v388, %v390
        %v393 = vsel %vm391, %v390, %v388
        %v394 = vlaneseq
        %v395 = vshrl.u32 %v394, 7
        %v396 = vsub.s32 2, %v395
        %v397 = vrot.slane %v342, %v396
        %v398 = vlaneseq
        %v399 = vshrl.u32 %v398, 7
        %v400 = vsub.s32 2, %v399
        %v401 = vrot.slane %v343, %v400
        %v402 = vmul.f32 %v393, %v397
        %v403 = vmul.f32 %v392, %v401
        %404 = vrot.lane.b32.xlu0 %v346, 1
        %v405 = vpop.permute.xlu0 %404
        %406 = vrot.lane.b32.xlu0 %v347, 1
        %v407 = vpop.permute.xlu0 %406
        %vm408 = vcmp.lt.s32.totalorder %v356, 1
        %v409 = vsel %vm408, %v405, %v407
        %v410 = vsel %vm408, %v407, %v405
        %v411 = vlaneseq
        %v412 = vshrl.u32 %v411, 7
        %v413 = vsub.s32 3, %v412
        %v414 = vrot.slane %v342, %v413
        %v415 = vlaneseq
        %v416 = vshrl.u32 %v415, 7
        %v417 = vsub.s32 3, %v416
        %v418 = vrot.slane %v343, %v417
        %v419 = vmul.f32 %v410, %v414
        %v420 = vmul.f32 %v409, %v418
        %421 = vrot.lane.b32.xlu0 %v346, 127
        %v422 = vpop.permute.xlu0 %421
        %423 = vrot.lane.b32.xlu0 %v347, 127
        %v424 = vpop.permute.xlu0 %423
        %vm425 = vcmp.lt.s32.totalorder %v356, 127
        %v426 = vsel %vm425, %v422, %v424
        %v427 = vsel %vm425, %v424, %v422
        %v428 = vlaneseq
        %v429 = vshrl.u32 %v428, 7
        %v430 = vsub.s32 5, %v429
        %v431 = vrot.slane %v342, %v430
        %v432 = vlaneseq
        %v433 = vshrl.u32 %v432, 7
        %v434 = vsub.s32 5, %v433
        %v435 = vrot.slane %v343, %v434
        %v436 = vmul.f32 %v426, %v431
        %v437 = vmul.f32 %v427, %v435
        %438 = vrot.lane.b32.xlu0 %v346, 113
        %v439 = vpop.permute.xlu0 %438
        %440 = vrot.lane.b32.xlu0 %v347, 113
        %v441 = vpop.permute.xlu0 %440
        %vm442 = vcmp.lt.s32.totalorder %v356, 113
        %v443 = vsel %vm442, %v439, %v441
        %v444 = vsel %vm442, %v441, %v439
        %v445 = vlaneseq
        %v446 = vshrl.u32 %v445, 7
        %v447 = vsub.s32 6, %v446
        %v448 = vrot.slane %v342, %v447
        %v449 = vlaneseq
        %v450 = vshrl.u32 %v449, 7
        %v451 = vsub.s32 6, %v450
        %v452 = vrot.slane %v343, %v451
        %v453 = vmul.f32 %v443, %v448
        %v454 = vmul.f32 %v444, %v452
        %455 = vrot.lane.b32.xlu0 %v346, 112
        %v456 = vpop.permute.xlu0 %455
        %457 = vrot.lane.b32.xlu0 %v347, 112
        %v458 = vpop.permute.xlu0 %457
        %vm459 = vcmp.lt.s32.totalorder %v356, 112
        %v460 = vsel %vm459, %v456, %v458
        %v461 = vsel %vm459, %v458, %v456
        %v462 = vlaneseq
        %v463 = vshrl.u32 %v462, 7
        %v464 = vsub.s32 7, %v463
        %v465 = vrot.slane %v342, %v464
        %v466 = vlaneseq
        %v467 = vshrl.u32 %v466, 7
        %v468 = vsub.s32 7, %v467
        %v469 = vrot.slane %v343, %v468
        %v470 = vmul.f32 %v460, %v465
        %v471 = vmul.f32 %v461, %v469
        %472 = vrot.lane.b32.xlu0 %v346, 111
        %v473 = vpop.permute.xlu0 %472
        %474 = vrot.lane.b32.xlu0 %v347, 111
        %v475 = vpop.permute.xlu0 %474
        %vm476 = vcmp.lt.s32.totalorder %v356, 111
        %v477 = vsel %vm476, %v473, %v475
        %v478 = vsel %vm476, %v475, %v473
        %v479 = vlaneseq
        %v480 = vshrl.u32 %v479, 7
        %v481 = vsub.s32 0, %v480
        %v482 = vrot.slane %v344, %v481
        %v483 = vlaneseq
        %v484 = vshrl.u32 %v483, 7
        %v485 = vsub.s32 0, %v484
        %v486 = vrot.slane %v345, %v485
        %v487 = vmul.f32 %v477, %v482
        %v488 = vmul.f32 %v478, %v486
        %v489 = vpack.c.bf16 %v385, %v368
        %v490 = vpack.c.bf16 %v386, %v369
        %v491 = vpack.c.bf16 %v419, %v402
        %v492 = vpack.c.bf16 %v420, %v403
        %v493 = vpack.c.bf16 %v436, %v346
        %v494 = vpack.c.bf16 %v437, %v347
        %v495 = vpack.c.bf16 %v470, %v453
        %v496 = vpack.c.bf16 %v471, %v454
        %v497 = vpack.c.bf16 %v487, %v487
        %v498 = vpack.c.bf16 %v488, %v488
        %v499 = vld [vmem:[#allocation10] sm:$0xff]
        %v500 = vld [vmem:[#allocation10 + $0x8] sm:$0xff]
        %v501 = vld [vmem:[#allocation10 + $0x10] sm:$0xff]
        %v502 = vld [vmem:[#allocation10 + $0x18] sm:$0xff]
        %v503 = vld [vmem:[#allocation10 + $0x20] sm:$0xff]
        %v504 = vld [vmem:[#allocation10 + $0x28] sm:$0xff]
        %v508 = vunpack.c.l.b16 %v348
        %v509 = vunpack.c.l.b16 %v349
        %v510 = vunpack.c.l.b16 %v350
        %v511 = vpack.c.b16 %v509, %v508
        %v512 = vpack.c.b16 %v510, %v510
        %vm513 = vcmask 588800
        %v515 = vsel %vm513, %v511, 0
        %v518 = vsel %vm513, %v512, 0
        %vm520 = vcmask 1043456
        %v522 = vsel %vm520, %v497, 0
        %v525 = vsel %vm520, %v498, 0
        %527 = vmatprep.subr.bf16.mxu0 %v490
        %528 = vmatpush1.bf16.msra.mxu0 %v489
        %529 = vmatprep.subr.bf16.mxu0 %v492
        %530 = vmatpush1.bf16.msra.mxu0 %v491
        %531 = vmatprep.subr.bf16.mxu0 %v494
        %532 = vmatpush1.bf16.msra.mxu0 %v493
        %533 = vmatprep.subr.bf16.mxu0 %v496
        %534 = vmatpush1.bf16.msra.mxu0 %v495
        %535 = vmatprep.subr.bf16.mxu0 %v525
        %536 = vmatpush1.bf16.msra.mxu0 %v522
        %537 = vmatprep.subr.bf16.mxu0 0
        %538 = vmatpush1.bf16.msra.mxu0 0
        %539 = vmatprep.subr.bf16.mxu0 0
        %540 = vmatpush1.bf16.msra.mxu0 0
        %541 = vmatprep.subr.bf16.mxu0 0
        %542 = vmatpush1.bf16.msra.mxu0 0
        %543 = vmatprep.subr.bf16.mxu0 0
        %544 = vmatpush1.bf16.msra.mxu0 0
        %545 = vmatprep.subr.bf16.mxu0 0
        %546 = vmatpush1.bf16.msra.mxu0 0
        %547 = vmatprep.subr.bf16.mxu0 0
        %548 = vmatpush1.bf16.msra.mxu0 0
        %549 = vmatprep.subr.bf16.mxu0 0
        %550 = vmatpush1.bf16.msra.mxu0 0
        %551 = vmatprep.subr.bf16.mxu0 0
        %552 = vmatpush1.bf16.msra.mxu0 0
        %553 = vmatprep.subr.bf16.mxu0 0
        %554 = vmatpush1.bf16.msra.mxu0 0
        %555 = vmatprep.subr.bf16.mxu0 0
        %556 = vmatpush1.bf16.msra.mxu0 0
        %557 = vmatprep.subr.bf16.mxu0 0
        %558 = vmatpush1.bf16.msra.mxu0 0
        %559 = vmatprep.mubr.bf16.mxu0 0
        %560 = vmatmul.mubr.bf16.gmra.mrb[0].mxu0 %v515
        %v561 = vpop.f32.mrb[0].mxu0
        %v562 = vadd.f32 %v499, %v561
        %v563 = vpop.f32.mrb[0].mxu0
        %v564 = vadd.f32 %v500, %v563
        %v565 = vpop.f32.mrb[0].mxu0
        %v566 = vadd.f32 %v501, %v565
        %v567 = vpop.f32.mrb[0].mxu0
        %v568 = vadd.f32 %v502, %v567
        %569 = vmatprep.mubr.bf16.mxu0 0
        %570 = vmatmul.mubr.bf16.gmra.mrb[0].mxu0 %v518
        %v571 = vpop.f32.mrb[0].mxu0
        %v572 = vadd.f32 %v503, %v571
        %v573 = vpop.f32.mrb[0].mxu0
        %v574 = vadd.f32 %v504, %v573
        %v575 = vpop.f32.mrb[0].mxu0
        %v576 = vpop.f32.mrb[0].mxu0
        %577 = vdwg.mxu0
        %v578 = vmax.f32 %v562, 0.0
        %v579 = vmax.f32 %v564, 0.0
        %v580 = vmax.f32 %v566, 0.0
        %v581 = vmax.f32 %v568, 0.0
        %v582 = vmax.f32 %v572, 0.0
        %v583 = vmax.f32 %v574, 0.0
        %v584 = vld [vmem:[#allocation7] sm:$0xff]
        %v585 = vld [vmem:[#allocation7 + $0x8] sm:$0xff]
        %v586 = vld [vmem:[#allocation7 + $0x10] sm:$0xff]
        %587 = vrot.lane.b32.xlu0 %v578, 17
        %v588 = vpop.permute.xlu0 %587
        %589 = vrot.lane.b32.xlu0 %v580, 17
        %v590 = vpop.permute.xlu0 %589
        %591 = vrot.lane.b32.xlu0 %v582, 17
        %v592 = vpop.permute.xlu0 %591
        %593 = vrot.lane.b32.xlu0 %v579, 17
        %v594 = vpop.permute.xlu0 %593
        %595 = vrot.lane.b32.xlu0 %v581, 17
        %v596 = vpop.permute.xlu0 %595
        %597 = vrot.lane.b32.xlu0 %v583, 17
        %v598 = vpop.permute.xlu0 %597
        %v599 = vsel %vm357, %v588, %v594
        %v600 = vsel %vm357, %v590, %v596
        %v601 = vsel %vm357, %v592, %v598
        %v602 = vsel %vm357, %v594, %v588
        %v603 = vsel %vm357, %v596, %v590
        %v604 = vsel %vm357, %v598, %v592
        %v605 = vmul.f32 %v602, %v363
        %v606 = vmul.f32 %v599, %v367
        %v607 = vmul.f32 %v603, %v363
        %v608 = vmul.f32 %v600, %v367
        %v609 = vmul.f32 %v604, %v363
        %v610 = vmul.f32 %v601, %v367
        %611 = vrot.lane.b32.xlu0 %v578, 16
        %v612 = vpop.permute.xlu0 %611
        %613 = vrot.lane.b32.xlu0 %v580, 16
        %v614 = vpop.permute.xlu0 %613
        %615 = vrot.lane.b32.xlu0 %v582, 16
        %v616 = vpop.permute.xlu0 %615
        %617 = vrot.lane.b32.xlu0 %v579, 16
        %v618 = vpop.permute.xlu0 %617
        %619 = vrot.lane.b32.xlu0 %v581, 16
        %v620 = vpop.permute.xlu0 %619
        %621 = vrot.lane.b32.xlu0 %v583, 16
        %v622 = vpop.permute.xlu0 %621
        %v623 = vsel %vm374, %v612, %v618
        %v624 = vsel %vm374, %v614, %v620
        %v625 = vsel %vm374, %v616, %v622
        %v626 = vsel %vm374, %v618, %v612
        %v627 = vsel %vm374, %v620, %v614
        %v628 = vsel %vm374, %v622, %v616
        %v629 = vmul.f32 %v626, %v380
        %v630 = vmul.f32 %v623, %v384
        %v631 = vmul.f32 %v627, %v380
        %v632 = vmul.f32 %v624, %v384
        %v633 = vmul.f32 %v628, %v380
        %v634 = vmul.f32 %v625, %v384
        %635 = vrot.lane.b32.xlu0 %v578, 15
        %v636 = vpop.permute.xlu0 %635
        %637 = vrot.lane.b32.xlu0 %v580, 15
        %v638 = vpop.permute.xlu0 %637
        %639 = vrot.lane.b32.xlu0 %v582, 15
        %v640 = vpop.permute.xlu0 %639
        %641 = vrot.lane.b32.xlu0 %v579, 15
        %v642 = vpop.permute.xlu0 %641
        %643 = vrot.lane.b32.xlu0 %v581, 15
        %v644 = vpop.permute.xlu0 %643
        %645 = vrot.lane.b32.xlu0 %v583, 15
        %v646 = vpop.permute.xlu0 %645
        %v647 = vsel %vm391, %v636, %v642
        %v648 = vsel %vm391, %v638, %v644
        %v649 = vsel %vm391, %v640, %v646
        %v650 = vsel %vm391, %v642, %v636
        %v651 = vsel %vm391, %v644, %v638
        %v652 = vsel %vm391, %v646, %v640
        %v653 = vmul.f32 %v650, %v397
        %v654 = vmul.f32 %v647, %v401
        %v655 = vmul.f32 %v651, %v397
        %v656 = vmul.f32 %v648, %v401
        %v657 = vmul.f32 %v652, %v397
        %v658 = vmul.f32 %v649, %v401
        %659 = vrot.lane.b32.xlu0 %v578, 1
        %v660 = vpop.permute.xlu0 %659
        %661 = vrot.lane.b32.xlu0 %v580, 1
        %v662 = vpop.permute.xlu0 %661
        %663 = vrot.lane.b32.xlu0 %v582, 1
        %v664 = vpop.permute.xlu0 %663
        %665 = vrot.lane.b32.xlu0 %v579, 1
        %v666 = vpop.permute.xlu0 %665
        %667 = vrot.lane.b32.xlu0 %v581, 1
        %v668 = vpop.permute.xlu0 %667
        %669 = vrot.lane.b32.xlu0 %v583, 1
        %v670 = vpop.permute.xlu0 %669
        %v671 = vsel %vm408, %v660, %v666
        %v672 = vsel %vm408, %v662, %v668
        %v673 = vsel %vm408, %v664, %v670
        %v674 = vsel %vm408, %v666, %v660
        %v675 = vsel %vm408, %v668, %v662
        %v676 = vsel %vm408, %v670, %v664
        %v677 = vmul.f32 %v674, %v414
        %v678 = vmul.f32 %v671, %v418
        %v679 = vmul.f32 %v675, %v414
        %v680 = vmul.f32 %v672, %v418
        %v681 = vmul.f32 %v676, %v414
        %v682 = vmul.f32 %v673, %v418
        %683 = vrot.lane.b32.xlu0 %v578, 127
        %v684 = vpop.permute.xlu0 %683
        %685 = vrot.lane.b32.xlu0 %v580, 127
        %v686 = vpop.permute.xlu0 %685
        %687 = vrot.lane.b32.xlu0 %v582, 127
        %v688 = vpop.permute.xlu0 %687
        %689 = vrot.lane.b32.xlu0 %v579, 127
        %v690 = vpop.permute.xlu0 %689
        %691 = vrot.lane.b32.xlu0 %v581, 127
        %v692 = vpop.permute.xlu0 %691
        %693 = vrot.lane.b32.xlu0 %v583, 127
        %v694 = vpop.permute.xlu0 %693
        %v695 = vsel %vm425, %v684, %v690
        %v696 = vsel %vm425, %v686, %v692
        %v697 = vsel %vm425, %v688, %v694
        %v698 = vsel %vm425, %v690, %v684
        %v699 = vsel %vm425, %v692, %v686
        %v700 = vsel %vm425, %v694, %v688
        %v701 = vmul.f32 %v695, %v431
        %v702 = vmul.f32 %v698, %v435
        %v703 = vmul.f32 %v696, %v431
        %v704 = vmul.f32 %v699, %v435
        %v705 = vmul.f32 %v697, %v431
        %v706 = vmul.f32 %v700, %v435
        %707 = vrot.lane.b32.xlu0 %v578, 113
        %v708 = vpop.permute.xlu0 %707
        %709 = vrot.lane.b32.xlu0 %v580, 113
        %v710 = vpop.permute.xlu0 %709
        %711 = vrot.lane.b32.xlu0 %v582, 113
        %v712 = vpop.permute.xlu0 %711
        %713 = vrot.lane.b32.xlu0 %v579, 113
        %v714 = vpop.permute.xlu0 %713
        %715 = vrot.lane.b32.xlu0 %v581, 113
        %v716 = vpop.permute.xlu0 %715
        %717 = vrot.lane.b32.xlu0 %v583, 113
        %v718 = vpop.permute.xlu0 %717
        %v719 = vsel %vm442, %v708, %v714
        %v720 = vsel %vm442, %v710, %v716
        %v721 = vsel %vm442, %v712, %v718
        %v722 = vsel %vm442, %v714, %v708
        %v723 = vsel %vm442, %v716, %v710
        %v724 = vsel %vm442, %v718, %v712
        %v725 = vmul.f32 %v719, %v448
        %v726 = vmul.f32 %v722, %v452
        %v727 = vmul.f32 %v720, %v448
        %v728 = vmul.f32 %v723, %v452
        %v729 = vmul.f32 %v721, %v448
        %v730 = vmul.f32 %v724, %v452
        %731 = vrot.lane.b32.xlu0 %v578, 112
        %v732 = vpop.permute.xlu0 %731
        %733 = vrot.lane.b32.xlu0 %v580, 112
        %v734 = vpop.permute.xlu0 %733
        %735 = vrot.lane.b32.xlu0 %v582, 112
        %v736 = vpop.permute.xlu0 %735
        %737 = vrot.lane.b32.xlu0 %v579, 112
        %v738 = vpop.permute.xlu0 %737
        %739 = vrot.lane.b32.xlu0 %v581, 112
        %v740 = vpop.permute.xlu0 %739
        %741 = vrot.lane.b32.xlu0 %v583, 112
        %v742 = vpop.permute.xlu0 %741
        %v743 = vsel %vm459, %v732, %v738
        %v744 = vsel %vm459, %v734, %v740
        %v745 = vsel %vm459, %v736, %v742
        %v746 = vsel %vm459, %v738, %v732
        %v747 = vsel %vm459, %v740, %v734
        %v748 = vsel %vm459, %v742, %v736
        %v749 = vmul.f32 %v743, %v465
        %v750 = vmul.f32 %v746, %v469
        %v751 = vmul.f32 %v744, %v465
        %v752 = vmul.f32 %v747, %v469
        %v753 = vmul.f32 %v745, %v465
        %v754 = vmul.f32 %v748, %v469
        %755 = vrot.lane.b32.xlu0 %v578, 111
        %v756 = vpop.permute.xlu0 %755
        %757 = vrot.lane.b32.xlu0 %v580, 111
        %v758 = vpop.permute.xlu0 %757
        %759 = vrot.lane.b32.xlu0 %v582, 111
        %v760 = vpop.permute.xlu0 %759
        %761 = vrot.lane.b32.xlu0 %v579, 111
        %v762 = vpop.permute.xlu0 %761
        %763 = vrot.lane.b32.xlu0 %v581, 111
        %v764 = vpop.permute.xlu0 %763
        %765 = vrot.lane.b32.xlu0 %v583, 111
        %v766 = vpop.permute.xlu0 %765
        %v767 = vsel %vm476, %v756, %v762
        %v768 = vsel %vm476, %v758, %v764
        %v769 = vsel %vm476, %v760, %v766
        %v770 = vsel %vm476, %v762, %v756
        %v771 = vsel %vm476, %v764, %v758
        %v772 = vsel %vm476, %v766, %v760
        %v773 = vmul.f32 %v767, %v482
        %v774 = vmul.f32 %v770, %v486
        %v775 = vmul.f32 %v768, %v482
        %v776 = vmul.f32 %v771, %v486
        %v777 = vmul.f32 %v769, %v482
        %v778 = vmul.f32 %v772, %v486
        %v779 = vpack.c.bf16 %v607, %v605
        %v780 = vpack.c.bf16 %v608, %v606
        %v781 = vpack.c.bf16 %v629, %v609
        %v782 = vpack.c.bf16 %v630, %v610
        %v783 = vpack.c.bf16 %v633, %v631
        %v784 = vpack.c.bf16 %v634, %v632
        %v785 = vpack.c.bf16 %v655, %v653
        %v786 = vpack.c.bf16 %v656, %v654
        %v787 = vpack.c.bf16 %v677, %v657
        %v788 = vpack.c.bf16 %v678, %v658
        %v789 = vpack.c.bf16 %v681, %v679
        %v790 = vpack.c.bf16 %v682, %v680
        %v791 = vpack.c.bf16 %v580, %v578
        %v792 = vpack.c.bf16 %v581, %v579
        %v793 = vpack.c.bf16 %v701, %v582
        %v794 = vpack.c.bf16 %v702, %v583
        %v795 = vpack.c.bf16 %v705, %v703
        %v796 = vpack.c.bf16 %v706, %v704
        %v797 = vpack.c.bf16 %v727, %v725
        %v798 = vpack.c.bf16 %v728, %v726
        %v799 = vpack.c.bf16 %v749, %v729
        %v800 = vpack.c.bf16 %v750, %v730
        %v801 = vpack.c.bf16 %v753, %v751
        %v802 = vpack.c.bf16 %v754, %v752
        %v803 = vpack.c.bf16 %v775, %v773
        %v804 = vpack.c.bf16 %v776, %v774
        %v805 = vpack.c.bf16 %v777, %v777
        %v806 = vpack.c.bf16 %v778, %v778
        %v807 = vld [vmem:[#allocation11] sm:$0xff]
        %v808 = vld [vmem:[#allocation11 + $0x8] sm:$0xff]
        %v809 = vld [vmem:[#allocation11 + $0x10] sm:$0xff]
        %v810 = vld [vmem:[#allocation11 + $0x18] sm:$0xff]
        %v811 = vld [vmem:[#allocation11 + $0x20] sm:$0xff]
        %v812 = vld [vmem:[#allocation11 + $0x28] sm:$0xff]
        %v816 = vunpack.c.l.b16 %v584
        %v817 = vunpack.c.h.b16 %v584
        %v818 = vunpack.c.l.b16 %v585
        %v819 = vunpack.c.h.b16 %v585
        %v820 = vunpack.c.l.b16 %v586
        %v821 = vunpack.c.h.b16 %v586
        %v822 = vpack.c.b16 %v818, %v816
        %v823 = vpack.c.b16 %v819, %v817
        %v824 = vpack.c.b16 %v820, %v820
        %v825 = vpack.c.b16 %v821, %v821
        %vm828 = vcmask 719872
        %v830 = vsel %vm828, %v823, 0
        %v833 = vsel %vm828, %v825, 0
        %v836 = vsel %vm520, %v805, 0
        %v839 = vsel %vm520, %v806, 0
        %841 = vmatprep.subr.bf16.mxu0 %v780
        %842 = vmatpush1.bf16.msra.mxu0 %v779
        %843 = vmatprep.subr.bf16.mxu0 %v782
        %844 = vmatpush1.bf16.msra.mxu0 %v781
        %845 = vmatprep.subr.bf16.mxu0 %v784
        %846 = vmatpush1.bf16.msra.mxu0 %v783
        %847 = vmatprep.subr.bf16.mxu0 %v786
        %848 = vmatpush1.bf16.msra.mxu0 %v785
        %849 = vmatprep.subr.bf16.mxu0 %v788
        %850 = vmatpush1.bf16.msra.mxu0 %v787
        %851 = vmatprep.subr.bf16.mxu0 %v790
        %852 = vmatpush1.bf16.msra.mxu0 %v789
        %853 = vmatprep.subr.bf16.mxu0 %v792
        %854 = vmatpush1.bf16.msra.mxu0 %v791
        %855 = vmatprep.subr.bf16.mxu0 %v794
        %856 = vmatpush1.bf16.msra.mxu0 %v793
        %857 = vmatprep.subr.bf16.mxu0 %v796
        %858 = vmatpush1.bf16.msra.mxu0 %v795
        %859 = vmatprep.subr.bf16.mxu0 %v798
        %860 = vmatpush1.bf16.msra.mxu0 %v797
        %861 = vmatprep.subr.bf16.mxu0 %v800
        %862 = vmatpush1.bf16.msra.mxu0 %v799
        %863 = vmatprep.subr.bf16.mxu0 %v802
        %864 = vmatpush1.bf16.msra.mxu0 %v801
        %865 = vmatprep.subr.bf16.mxu0 %v804
        %866 = vmatpush1.bf16.msra.mxu0 %v803
        %867 = vmatprep.subr.bf16.mxu0 %v839
        %868 = vmatpush1.bf16.msra.mxu0 %v836
        %869 = vmatprep.subr.bf16.mxu0 0
        %870 = vmatpush1.bf16.msra.mxu0 0
        %871 = vmatprep.subr.bf16.mxu0 0
        %872 = vmatpush1.bf16.msra.mxu0 0
        %873 = vmatprep.mubr.bf16.mxu0 %v830
        %874 = vmatmul.mubr.bf16.gmra.mrb[0].mxu0 %v822
        %v875 = vpop.f32.mrb[0].mxu0
        %v876 = vadd.f32 %v807, %v875
        %v877 = vpop.f32.mrb[0].mxu0
        %v878 = vadd.f32 %v808, %v877
        %v879 = vpop.f32.mrb[0].mxu0
        %v880 = vadd.f32 %v809, %v879
        %v881 = vpop.f32.mrb[0].mxu0
        %v882 = vadd.f32 %v810, %v881
        %883 = vmatprep.mubr.bf16.mxu0 %v833
        %884 = vmatmul.mubr.bf16.gmra.mrb[0].mxu0 %v824
        %v885 = vpop.f32.mrb[0].mxu0
        %v886 = vadd.f32 %v811, %v885
        %v887 = vpop.f32.mrb[0].mxu0
        %v888 = vadd.f32 %v812, %v887
        %v889 = vpop.f32.mrb[0].mxu0
        %v890 = vpop.f32.mrb[0].mxu0
        %891 = vdwg.mxu0
        %v892 = vmax.f32 %v876, 0.0
        %v893 = vmax.f32 %v878, 0.0
        %v894 = vmax.f32 %v880, 0.0
        %v895 = vmax.f32 %v882, 0.0
        %v896 = vmax.f32 %v886, 0.0
        %v897 = vmax.f32 %v888, 0.0
        %898 = vst [vmem:[%s340] sm:$0xff] %v892
        %899 = vst [vmem:[%s340 + $0x8] sm:$0xff] %v893
        %900 = vst [vmem:[%s340 + $0x10] sm:$0xff] %v894
        %901 = vst [vmem:[%s340 + $0x18] sm:$0xff] %v895
        %902 = vst [vmem:[%s340 + $0x20] sm:$0xff] %v896
        %903 = vst [vmem:[%s340 + $0x28] sm:$0xff] %v897
        %s904 = sand.u32 %s165, 1
        %s905 = scalar_lea.sflag [#allocation4], %s904
        %s906 = sand.u32 %s165, 1
        %s907 = smul.addr %s906, 48
        %s908 = scalar_lea.vmem [#allocation13], %s907
        // Predicated region
        $region69: #{tpu_custom_call.1} parent=43 // pred_check
          %p909 = pneg %p175
        $region70: #{tpu_custom_call.1} parent=43 // pred_check_branch
          %911 = sbr.rel (%p909) target = $region72
        $region71: #{tpu_custom_call.1} parent=43 // pred_region
          %s913 = ssub.s32 768, 768
          %914 = vsyncadd %s905, %s913
          %s915 = smul.addr %s26, 6
          %s916 = smul.addr %s915, 128
          %s917 = scalar_lea.hbm %s6, %s916
          %s918 = sshll.u32 %s908, 4
          %s919 = int_to_ptr.vmem [resolvable:$true] %s918
          %924 = dma.vmem_to_hbm [thread:$0]  %s919, 768, %s917, %s905, 256, 256, 16
        $region72: #{tpu_custom_call.1} parent=43 // pred_fallthru
          _
      $region44: #{tpu_custom_call.1} parent=5 // pred_fallthru
        _
      %p925 = scmp.le.s32.totalorder 2, %s21
      // Predicated region
      $region73: #{tpu_custom_call.1} parent=5 // pred_check
        %p926 = pneg %p925
      $region74: #{tpu_custom_call.1} parent=5 // pred_check_branch
        %928 = sbr.rel (%p926) target = $region76
      $region75: #{tpu_custom_call.1} parent=5 // pred_region
        %s929 = ssub.s32 %s21, 2
        // Predicated region
        $region77: #{tpu_custom_call.1} parent=75 // pred_check
          %p930 = pneg %p181
        $region78: #{tpu_custom_call.1} parent=75 // pred_check_branch
          %932 = sbr.rel (%p930) target = $region80
        $region79: #{tpu_custom_call.1} parent=75 // pred_region
          %s933 = sand.u32 %s166, 1
          %s934 = scalar_lea.sflag [#allocation4], %s933
          %s935 = sand.u32 %s166, 1
          %s936 = smul.addr %s935, 48
          %s937 = scalar_lea.vmem [#allocation13], %s936
          %938 = dma.done %s934, 768
        $region80: #{tpu_custom_call.1} parent=75 // pred_fallthru
          _
      $region76: #{tpu_custom_call.1} parent=5 // pred_fallthru
        _
    $region6: #{tpu_custom_call.1} parent=1 // loop_footer
      %s25 = sadd.s32 1, %s21
    $region7: #{tpu_custom_call.1} parent=1 // loop_footer_branch
      %20 = sbr.rel target = $region3
    $region8: #{tpu_custom_call.1} parent=1 // loop_exit
      _
    %939 = vsyncpa [#allocation3], 1
    %s940 = scalar_lea.sflag [#allocation3], 1
    %941 = vsyncpa %s940, 1
    %942 = vsyncpa [#allocation6], 1
    %943 = vsyncpa [#allocation9], 1
    %944 = vsyncpa [#allocation12], 1
    %945 = vsyncpa [#allocation4], 1
    %s946 = scalar_lea.sflag [#allocation4], 1
    %947 = vsyncpa %s946, 1

</llo_original>
